<compile_context>
chip_gen: v5e
topology: v5e:2x2
jax: 0.10.0
libtpu: 0.0.40
codegen_flags: <defaults>
</compile_context>

<pallas_src>
import jax
import jax.numpy as jnp
from jax.experimental import pallas as pl
from jax.experimental.pallas import tpu as pltpu

LANE = 128


def _round_up(x, m):
    return ((x + m - 1) // m) * m


def dqn_kernel(x_ref, w1_ref, w2_ref, w3_ref, b_ref, o_ref):
    # Fused 3-layer MLP on one batch tile, full f32 (MXU accumulates in f32).
    hidden = w1_ref.shape[1]
    out_w = w3_ref.shape[1]

    x = x_ref[...]                                                  # (tb, in_dim) f32
    h1 = jnp.dot(x, w1_ref[...], preferred_element_type=jnp.float32) + b_ref[0:1, :hidden]
    h1 = jnp.maximum(h1, 0.0)
    h2 = jnp.dot(h1, w2_ref[...], preferred_element_type=jnp.float32) + b_ref[1:2, :hidden]
    h2 = jnp.maximum(h2, 0.0)
    out = jnp.dot(h2, w3_ref[...], preferred_element_type=jnp.float32) + b_ref[2:3, :out_w]
    o_ref[...] = out.astype(o_ref.dtype)                            # lane-dense (tb, 128) store


def prepare_params(params):
    """One-time weight prep (hoisted out of the per-forward path).

    Pads the output projection to a full 128-lane tile and fuses the three
    biases into a single (3, W) array (one DMA stream). Everything stays f32.
    """
    w1 = jnp.asarray(params["w1"], jnp.float32)
    w2 = jnp.asarray(params["w2"], jnp.float32)
    w3 = jnp.asarray(params["w3"], jnp.float32)
    b1 = jnp.asarray(params["b1"], jnp.float32).reshape(-1)
    b2 = jnp.asarray(params["b2"], jnp.float32).reshape(-1)
    b3 = jnp.asarray(params["b3"], jnp.float32).reshape(-1)

    in_dim, hidden = w1.shape
    out_dim = w3.shape[1]
    # Robustness: the fused kernel assumes the hidden width is lane-aligned.
    assert hidden % LANE == 0, "hidden width must be a multiple of 128 lanes"
    assert w2.shape == (hidden, hidden) and w3.shape[0] == hidden

    out_p = _round_up(max(out_dim, LANE), LANE)
    w3p = jnp.pad(w3, ((0, 0), (0, out_p - out_dim)))
    width = max(hidden, out_p)
    b_all = jnp.stack([
        jnp.pad(b1, (0, width - hidden)),
        jnp.pad(b2, (0, width - hidden)),
        jnp.pad(b3, (0, width - out_dim)),
    ])  # (3, width)

    return {"w1": w1, "w2": w2, "w3": w3p, "b": b_all}


def dqn_forward(x, prepared, out_dim, *, block_b=1024):
    """x: (B, input_dim) f32.  prepared: output of prepare_params.  Returns (B, out_dim) f32."""
    w1, w2, w3, b_all = prepared["w1"], prepared["w2"], prepared["w3"], prepared["b"]
    B, in_dim = x.shape
    assert w1.shape[0] == in_dim
    hidden = w1.shape[1]
    out_p = w3.shape[1]

    # Batch tiling: one grid step for small batches (no pointless megacore
    # split on v7x); otherwise block_b-row tiles (512+ fills the 256-row MXU
    # on v6e/v7x and amortizes per-step overhead).
    tb = _round_up(B, 8) if B <= block_b else block_b
    Bp = _round_up(B, tb)
    nb = Bp // tb
    if Bp != B:
        x = jnp.pad(x, ((0, Bp - B), (0, 0)))  # batch rows only; no lane pad, no cast

    const = lambda shape: pl.BlockSpec(shape, lambda i: (0, 0))  # VMEM-resident weights

    flops = 2 * Bp * (in_dim * hidden + hidden * hidden + hidden * out_p)
    bytes_accessed = 4 * (Bp * in_dim + w1.size + w2.size + w3.size + b_all.size + Bp * out_p)

    out = pl.pallas_call(
        dqn_kernel,
        out_shape=jax.ShapeDtypeStruct((Bp, out_p), jnp.float32),
        grid=(nb,),
        in_specs=[
            pl.BlockSpec((tb, in_dim), lambda i: (i, 0)),  # x: tiled over batch, 32-lane reads
            const((in_dim, hidden)),                        # w1
            const((hidden, hidden)),                        # w2
            const((hidden, out_p)),                         # w3 (lane-padded)
            const((3, b_all.shape[1])),                     # fused biases, one DMA stream
        ],
        out_specs=pl.BlockSpec((tb, out_p), lambda i: (i, 0)),  # lane-dense unmasked store
        compiler_params=pltpu.CompilerParams(
            dimension_semantics=("parallel",)),             # batch tiles -> both TCs on v7x
        cost_estimate=pl.CostEstimate(
            flops=flops, transcendentals=0, bytes_accessed=bytes_accessed),
    )(x, w1, w2, w3, b_all)

    return out[:B, :out_dim]


def init_dqn_params(key, input_dim, output_dim, hidden=128):
    """Deterministic init mirroring PyTorch nn.Linear default (uniform +/-1/sqrt(fan_in)).
    Weights stored as (in, out) = transpose of the PyTorch layout."""
    ks = jax.random.split(key, 6)

    def linear(kw, kb, fan_in, fan_out):
        bound = 1.0 / jnp.sqrt(jnp.float32(fan_in))
        w = jax.random.uniform(kw, (fan_in, fan_out), jnp.float32, -bound, bound)
        b = jax.random.uniform(kb, (1, fan_out), jnp.float32, -bound, bound)
        return w, b

    w1, b1 = linear(ks[0], ks[1], input_dim, hidden)
    w2, b2 = linear(ks[2], ks[3], hidden, hidden)
    w3, b3 = linear(ks[4], ks[5], hidden, output_dim)
    return {"w1": w1, "b1": b1, "w2": w2, "b2": b2, "w3": w3, "b3": b3}


def dqn_reference(x, params):
    # Full-precision f32 reference (PyTorch-equivalent forward).
    hp = jax.lax.Precision.HIGHEST
    h1 = jnp.maximum(jnp.dot(x, params["w1"], precision=hp) + params["b1"], 0.0)
    h2 = jnp.maximum(jnp.dot(h1, params["w2"], precision=hp) + params["b2"], 0.0)
    return jnp.dot(h2, params["w3"], precision=hp) + params["b3"]


if __name__ == "__main__":
    key = jax.random.PRNGKey(0)
    k_params, k_x1, k_x2 = jax.random.split(key, 3)

    input_dim = 32     # poker state feature vector
    output_dim = 8     # number of discrete actions

    params = init_dqn_params(k_params, input_dim, output_dim)
    prepared = prepare_params(params)      # one-time weight prep, outside the forward path

    fwd = jax.jit(dqn_forward, static_argnames=("out_dim", "block_b"))

    # Case 1: small batch -> single grid step (whole batch in one tile).
    x1 = jax.random.normal(k_x1, (64, input_dim), jnp.float32)
    out1 = jax.block_until_ready(fwd(x1, prepared, out_dim=output_dim))
    assert out1.shape == (64, output_dim)
    ref1 = dqn_reference(x1, params)
    assert jnp.allclose(out1, ref1, atol=1e-2, rtol=1e-2), "mismatch vs f32 reference (case 1)"

    # Case 2: non-tile-aligned batch with 128-row tiles -> exercises the batch
    # grid and row-padding path.
    x2 = jax.random.normal(k_x2, (300, input_dim), jnp.float32)
    out2 = jax.block_until_ready(fwd(x2, prepared, out_dim=output_dim, block_b=128))
    assert out2.shape == (300, output_dim)
    ref2 = dqn_reference(x2, params)
    assert jnp.allclose(out2, ref2, atol=1e-2, rtol=1e-2), "mismatch vs f32 reference (case 2)"

    print("KERNEL_OK")
</pallas_src>

<mosaic_0001>
module attributes {stable_mosaic.version = 11 : i64} {
  func.func @dqn_kernel(%arg0: i32, %arg1: memref<64x32xf32, #tpu.memory_space<vmem>>, %arg2: memref<32x128xf32, #tpu.memory_space<vmem>>, %arg3: memref<128x128xf32, #tpu.memory_space<vmem>>, %arg4: memref<128x128xf32, #tpu.memory_space<vmem>>, %arg5: memref<3x128xf32, #tpu.memory_space<vmem>>, %arg6: memref<64x128xf32, #tpu.memory_space<vmem>>) attributes {dimension_semantics = [#tpu.dimension_semantics<parallel>], iteration_bounds = array<i64: 1>, scalar_prefetch = 0 : i64, scratch_operands = 0 : i64, tpu.core_type = #tpu.core_type<tc>, window_params = [{transform_indices = @transform_0, window_bounds = array<i64: 64, 32>}, {pipeline_mode = #tpu.pipeline_mode<synchronous>, transform_indices = @transform_1, window_bounds = array<i64: 32, 128>}, {pipeline_mode = #tpu.pipeline_mode<synchronous>, transform_indices = @transform_2, window_bounds = array<i64: 128, 128>}, {pipeline_mode = #tpu.pipeline_mode<synchronous>, transform_indices = @transform_3, window_bounds = array<i64: 128, 128>}, {pipeline_mode = #tpu.pipeline_mode<synchronous>, transform_indices = @transform_4, window_bounds = array<i64: 3, 128>}, {transform_indices = @transform_5, window_bounds = array<i64: 64, 128>}]} {
    %c0 = arith.constant 0 : index
    %c0_0 = arith.constant 0 : index
    %0 = vector.load %arg1[%c0, %c0_0] : memref<64x32xf32, #tpu.memory_space<vmem>>, vector<64x32xf32>
    %c0_1 = arith.constant 0 : index
    %c0_2 = arith.constant 0 : index
    %1 = vector.load %arg2[%c0_1, %c0_2] : memref<32x128xf32, #tpu.memory_space<vmem>>, vector<32x128xf32>
    %cst = arith.constant dense<0.000000e+00> : vector<64x128xf32>
    %2 = tpu.matmul %0, %1, %cst {dimension_numbers = #tpu.dot_dimension_numbers<[1], [0], [0], [1], [0, 0, 1, 1], [], []>} : vector<64x32xf32>, vector<32x128xf32>, vector<64x128xf32> -> vector<64x128xf32>
    %c0_3 = arith.constant 0 : index
    %c0_4 = arith.constant 0 : index
    %3 = vector.load %arg5[%c0_3, %c0_4] : memref<3x128xf32, #tpu.memory_space<vmem>>, vector<1x128xf32>
    %4 = vector.broadcast %3 : vector<1x128xf32> to vector<64x128xf32>
    %5 = arith.addf %2, %4 : vector<64x128xf32>
    %cst_5 = arith.constant 0.000000e+00 : f32
    %6 = vector.broadcast %cst_5 : f32 to vector<64x128xf32>
    %7 = arith.maximumf %5, %6 : vector<64x128xf32>
    %c0_6 = arith.constant 0 : index
    %c0_7 = arith.constant 0 : index
    %8 = vector.load %arg3[%c0_6, %c0_7] : memref<128x128xf32, #tpu.memory_space<vmem>>, vector<128x128xf32>
    %cst_8 = arith.constant dense<0.000000e+00> : vector<64x128xf32>
    %9 = tpu.matmul %7, %8, %cst_8 {dimension_numbers = #tpu.dot_dimension_numbers<[1], [0], [0], [1], [0, 0, 1, 1], [], []>} : vector<64x128xf32>, vector<128x128xf32>, vector<64x128xf32> -> vector<64x128xf32>
    %c1 = arith.constant 1 : index
    %c0_9 = arith.constant 0 : index
    %10 = vector.load %arg5[%c1, %c0_9] : memref<3x128xf32, #tpu.memory_space<vmem>>, vector<1x128xf32>
    %11 = vector.broadcast %10 : vector<1x128xf32> to vector<64x128xf32>
    %12 = arith.addf %9, %11 : vector<64x128xf32>
    %cst_10 = arith.constant 0.000000e+00 : f32
    %13 = vector.broadcast %cst_10 : f32 to vector<64x128xf32>
    %14 = arith.maximumf %12, %13 : vector<64x128xf32>
    %c0_11 = arith.constant 0 : index
    %c0_12 = arith.constant 0 : index
    %15 = vector.load %arg4[%c0_11, %c0_12] : memref<128x128xf32, #tpu.memory_space<vmem>>, vector<128x128xf32>
    %cst_13 = arith.constant dense<0.000000e+00> : vector<64x128xf32>
    %16 = tpu.matmul %14, %15, %cst_13 {dimension_numbers = #tpu.dot_dimension_numbers<[1], [0], [0], [1], [0, 0, 1, 1], [], []>} : vector<64x128xf32>, vector<128x128xf32>, vector<64x128xf32> -> vector<64x128xf32>
    %c2 = arith.constant 2 : index
    %c0_14 = arith.constant 0 : index
    %17 = vector.load %arg5[%c2, %c0_14] : memref<3x128xf32, #tpu.memory_space<vmem>>, vector<1x128xf32>
    %18 = vector.broadcast %17 : vector<1x128xf32> to vector<64x128xf32>
    %19 = arith.addf %16, %18 : vector<64x128xf32>
    %c0_15 = arith.constant 0 : index
    %c0_16 = arith.constant 0 : index
    %20 = vector.load %arg6[%c0_15, %c0_16] : memref<64x128xf32, #tpu.memory_space<vmem>>, vector<64x128xf32>
    tpu.vector_store %arg6[%c0_15, %c0_16], %19 {strides = array<i32>} : memref<64x128xf32, #tpu.memory_space<vmem>>, vector<64x128xf32>,
    return
  }
  func.func @transform_0(%arg0: i32) -> (i32, i32) {
    %c0_i32 = arith.constant 0 : i32
    %c0_i32_0 = arith.constant 0 : i32
    return %arg0, %c0_i32 : i32, i32
  }
  func.func @transform_1(%arg0: i32) -> (i32, i32) {
    %c0_i32 = arith.constant 0 : i32
    %c0_i32_0 = arith.constant 0 : i32
    %c0_i32_1 = arith.constant 0 : i32
    return %c0_i32, %c0_i32_0 : i32, i32
  }
  func.func @transform_2(%arg0: i32) -> (i32, i32) {
    %c0_i32 = arith.constant 0 : i32
    %c0_i32_0 = arith.constant 0 : i32
    %c0_i32_1 = arith.constant 0 : i32
    return %c0_i32, %c0_i32_0 : i32, i32
  }
  func.func @transform_3(%arg0: i32) -> (i32, i32) {
    %c0_i32 = arith.constant 0 : i32
    %c0_i32_0 = arith.constant 0 : i32
    %c0_i32_1 = arith.constant 0 : i32
    return %c0_i32, %c0_i32_0 : i32, i32
  }
  func.func @transform_4(%arg0: i32) -> (i32, i32) {
    %c0_i32 = arith.constant 0 : i32
    %c0_i32_0 = arith.constant 0 : i32
    %c0_i32_1 = arith.constant 0 : i32
    return %c0_i32, %c0_i32_0 : i32, i32
  }
  func.func @transform_5(%arg0: i32) -> (i32, i32) {
    %c0_i32 = arith.constant 0 : i32
    %c0_i32_0 = arith.constant 0 : i32
    return %arg0, %c0_i32 : i32, i32
  }
}

</mosaic_0001>

<llo_original>
// kernel: dqn_forward.1
$region0: #{dqn_forward.1}
  #allocation0 [shape = 'u32[]', space=smem, size = 0x4, offset = 0x4, fixed_abs, tag = 'smem constant byte address 0x4 - core index']
  #allocation1 [shape = 'u32[72,128]{1,0:T(1,128)}', space=vmem, size = 0x9000, scoped, tag = 'internal scratch']
  %s0 = inlined_call_operand.vmem [shape: f32[64,32], index: 0, kind: input, shape index: {}]
  %s1 = inlined_call_operand.vmem [shape: f32[32,128], index: 1, kind: input, shape index: {}]
  %s2 = inlined_call_operand.hbm [shape: f32[128,128], index: 2, kind: input, shape index: {}]
  %s3 = inlined_call_operand.hbm [shape: f32[128,128], index: 3, kind: input, shape index: {}]
  %s4 = inlined_call_operand.vmem [shape: f32[3,128], index: 4, kind: input, shape index: {}]
  %s5 = inlined_call_operand.vmem [shape: f32[64,128], index: 5, kind: output, shape index: {}]
  %s6 = sld [smem:[#allocation0]]
  $region38: #{dqn_forward.1} parent=0
    _
  %s8 = ssub.s32 1, %s6
  %s9 = scalar_select 0, %s8, %s6
  $region1: #{dqn_forward.1} parent=0
    #allocation2 [shape = 'u8[65536]{0}', space=vmem, size = 0x10000, scoped, tag = 'input window, operand 2, single buffered']
    #allocation3 [shape = 's32[1]{0}', space=sflag, size = 0x4, scoped, tag = 'scoped memory for dqn_forward.1']
    #allocation4 [shape = 'u8[65536]{0}', space=vmem, size = 0x10000, scoped, tag = 'input window, operand 3, single buffered']
    #allocation5 [shape = 's32[1]{0}', space=sflag, size = 0x4, scoped, tag = 'scoped memory for dqn_forward.1']
    %10 = vsyncpa [#allocation3], 0
    %11 = vsyncpa [#allocation5], 0
    // Predicated region
    $region2: #{dqn_forward.1} parent=1 // pred_check
      _
    $region3: #{dqn_forward.1} parent=1 // pred_check_branch
      %13 = sbr.rel (0) target = $region5
    $region4: #{dqn_forward.1} parent=1 // pred_region
      _
    $region5: #{dqn_forward.1} parent=1 // pred_fallthru
      _
    // Predicated region
    $region6: #{dqn_forward.1} parent=1 // pred_check
      _
    $region7: #{dqn_forward.1} parent=1 // pred_check_branch
      %15 = sbr.rel (0) target = $region9
    $region8: #{dqn_forward.1} parent=1 // pred_region
      _
    $region9: #{dqn_forward.1} parent=1 // pred_fallthru
      _
    // Predicated region
    $region10: #{dqn_forward.1} parent=1 // pred_check
      _
    $region11: #{dqn_forward.1} parent=1 // pred_check_branch
      %17 = sbr.rel (0) target = $region13
    $region12: #{dqn_forward.1} parent=1 // pred_region
      %19 = vsyncadd [#allocation3], 0
      %s20 = sshll.u32 %s2, 4
      %s21 = int_to_ptr.hbm [resolvable:$true] %s20
      %s22 = sshll.u32 [#allocation2], 4
      %s23 = int_to_ptr.vmem [resolvable:$true] %s22
      %28 = dma.hbm_to_vmem [thread:$0]  %s21, 2048, %s23, [#allocation3], 128, 128, 8
    $region13: #{dqn_forward.1} parent=1 // pred_fallthru
      _
    // Predicated region
    $region14: #{dqn_forward.1} parent=1 // pred_check
      _
    $region15: #{dqn_forward.1} parent=1 // pred_check_branch
      %30 = sbr.rel (0) target = $region17
    $region16: #{dqn_forward.1} parent=1 // pred_region
      %32 = vsyncadd [#allocation5], 0
      %s33 = sshll.u32 %s3, 4
      %s34 = int_to_ptr.hbm [resolvable:$true] %s33
      %s35 = sshll.u32 [#allocation4], 4
      %s36 = int_to_ptr.vmem [resolvable:$true] %s35
      %41 = dma.hbm_to_vmem [thread:$0]  %s34, 2048, %s36, [#allocation5], 128, 128, 8
    $region17: #{dqn_forward.1} parent=1 // pred_fallthru
      _
    // Predicated region
    $region18: #{dqn_forward.1} parent=1 // pred_check
      _
    $region19: #{dqn_forward.1} parent=1 // pred_check_branch
      %43 = sbr.rel (0) target = $region21
    $region20: #{dqn_forward.1} parent=1 // pred_region
      _
    $region21: #{dqn_forward.1} parent=1 // pred_fallthru
      _
    // Predicated region
    $region22: #{dqn_forward.1} parent=1 // pred_check
      _
    $region23: #{dqn_forward.1} parent=1 // pred_check_branch
      %45 = sbr.rel (0) target = $region25
    $region24: #{dqn_forward.1} parent=1 // pred_region
      %47 = dma.done [#allocation3], 2048
    $region25: #{dqn_forward.1} parent=1 // pred_fallthru
      _
    // Predicated region
    $region26: #{dqn_forward.1} parent=1 // pred_check
      _
    $region27: #{dqn_forward.1} parent=1 // pred_check_branch
      %49 = sbr.rel (0) target = $region29
    $region28: #{dqn_forward.1} parent=1 // pred_region
      %51 = dma.done [#allocation5], 2048
    $region29: #{dqn_forward.1} parent=1 // pred_fallthru
      _
    %v52 = vld [vmem:[%s0] sm:$0xff]
    %v53 = vld [vmem:[%s0 + $0x8] sm:$0xff]
    %v54 = vld [vmem:[%s0 + $0x10] sm:$0xff]
    %v55 = vld [vmem:[%s0 + $0x18] sm:$0xff]
    %v56 = vld [vmem:[%s0 + $0x20] sm:$0xff]
    %v57 = vld [vmem:[%s0 + $0x28] sm:$0xff]
    %v58 = vld [vmem:[%s0 + $0x30] sm:$0xff]
    %v59 = vld [vmem:[%s0 + $0x38] sm:$0xff]
    %v60 = vld [vmem:[%s1] sm:$0xff]
    %v61 = vld [vmem:[%s1 + $0x8] sm:$0xff]
    %v62 = vld [vmem:[%s1 + $0x10] sm:$0xff]
    %v63 = vld [vmem:[%s1 + $0x18] sm:$0xff]
    %v64 = vld [vmem:[%s4] sm:$0x1]
    %v65 = vperm.slane %v64, 0
    %vm66 = vcmask 261120
    %v68 = vsel %vm66, %v52, 0
    %v71 = vsel %vm66, %v53, 0
    %v74 = vsel %vm66, %v54, 0
    %v77 = vsel %vm66, %v55, 0
    %v80 = vsel %vm66, %v56, 0
    %v83 = vsel %vm66, %v57, 0
    %v86 = vsel %vm66, %v58, 0
    %v89 = vsel %vm66, %v59, 0
    %91 = vmatpush.msra.mxu0 0.0
    %92 = vmatpush.msra.mxu0 0.0
    %93 = vmatpush.msra.mxu0 0.0
    %94 = vmatpush.msra.mxu0 0.0
    %95 = vmatpush.msra.mxu0 0.0
    %96 = vmatpush.msra.mxu0 0.0
    %97 = vmatpush.msra.mxu0 0.0
    %98 = vmatpush.msra.mxu0 0.0
    %99 = vmatpush.msra.mxu0 0.0
    %100 = vmatpush.msra.mxu0 0.0
    %101 = vmatpush.msra.mxu0 0.0
    %102 = vmatpush.msra.mxu0 0.0
    %103 = vmatpush.msra.mxu0 %v63
    %104 = vmatpush.msra.mxu0 %v62
    %105 = vmatpush.msra.mxu0 %v61
    %106 = vmatpush.msra.mxu0 %v60
    %107 = vmatmul.f32.gmra.mxu0 %v68
    %v108 = vpop.f32.mrf.mxu0
    %v109 = vadd.f32 %v65, %v108
    %110 = vmatmul.f32.gmra.mxu0 %v71
    %v111 = vpop.f32.mrf.mxu0
    %v112 = vadd.f32 %v65, %v111
    %113 = vmatmul.f32.gmra.mxu0 %v74
    %v114 = vpop.f32.mrf.mxu0
    %v115 = vadd.f32 %v65, %v114
    %116 = vmatmul.f32.gmra.mxu0 %v77
    %v117 = vpop.f32.mrf.mxu0
    %v118 = vadd.f32 %v65, %v117
    %119 = vmatmul.f32.gmra.mxu0 %v80
    %v120 = vpop.f32.mrf.mxu0
    %v121 = vadd.f32 %v65, %v120
    %122 = vmatmul.f32.gmra.mxu0 %v83
    %v123 = vpop.f32.mrf.mxu0
    %v124 = vadd.f32 %v65, %v123
    %125 = vmatmul.f32.gmra.mxu0 %v86
    %v126 = vpop.f32.mrf.mxu0
    %v127 = vadd.f32 %v65, %v126
    %128 = vmatmul.f32.gmra.mxu0 %v89
    %v129 = vpop.f32.mrf.mxu0
    %v130 = vadd.f32 %v65, %v129
    %131 = vdwg.mxu0
    %v132 = vmax.f32 %v109, 0.0
    %v133 = vmax.f32 %v112, 0.0
    %v134 = vmax.f32 %v115, 0.0
    %v135 = vmax.f32 %v118, 0.0
    %v136 = vmax.f32 %v121, 0.0
    %v137 = vmax.f32 %v124, 0.0
    %v138 = vmax.f32 %v127, 0.0
    %v139 = vmax.f32 %v130, 0.0
    %v140 = vld [vmem:[#allocation2] sm:$0xff]
    %v141 = vld [vmem:[#allocation2 + $0x8] sm:$0xff]
    %v142 = vld [vmem:[#allocation2 + $0x10] sm:$0xff]
    %v143 = vld [vmem:[#allocation2 + $0x18] sm:$0xff]
    %v144 = vld [vmem:[#allocation2 + $0x20] sm:$0xff]
    %v145 = vld [vmem:[#allocation2 + $0x28] sm:$0xff]
    %v146 = vld [vmem:[#allocation2 + $0x30] sm:$0xff]
    %v147 = vld [vmem:[#allocation2 + $0x38] sm:$0xff]
    %v148 = vld [vmem:[#allocation2 + $0x40] sm:$0xff]
    %v149 = vld [vmem:[#allocation2 + $0x48] sm:$0xff]
    %v150 = vld [vmem:[#allocation2 + $0x50] sm:$0xff]
    %v151 = vld [vmem:[#allocation2 + $0x58] sm:$0xff]
    %v152 = vld [vmem:[#allocation2 + $0x60] sm:$0xff]
    %v153 = vld [vmem:[#allocation2 + $0x68] sm:$0xff]
    %v154 = vld [vmem:[#allocation2 + $0x70] sm:$0xff]
    %v155 = vld [vmem:[#allocation2 + $0x78] sm:$0xff]
    %v156 = vld [vmem:[%s4 + $0x1] sm:$0x1]
    %v157 = vperm.slane %v156, 0
    %158 = vmatpush.msra.mxu0 %v155
    %159 = vmatpush.msra.mxu0 %v154
    %160 = vmatpush.msra.mxu0 %v153
    %161 = vmatpush.msra.mxu0 %v152
    %162 = vmatpush.msra.mxu0 %v151
    %163 = vmatpush.msra.mxu0 %v150
    %164 = vmatpush.msra.mxu0 %v149
    %165 = vmatpush.msra.mxu0 %v148
    %166 = vmatpush.msra.mxu0 %v147
    %167 = vmatpush.msra.mxu0 %v146
    %168 = vmatpush.msra.mxu0 %v145
    %169 = vmatpush.msra.mxu0 %v144
    %170 = vmatpush.msra.mxu0 %v143
    %171 = vmatpush.msra.mxu0 %v142
    %172 = vmatpush.msra.mxu0 %v141
    %173 = vmatpush.msra.mxu0 %v140
    %174 = vmatmul.f32.gmra.mxu0 %v132
    %v175 = vpop.f32.mrf.mxu0
    %v176 = vadd.f32 %v157, %v175
    %177 = vmatmul.f32.gmra.mxu0 %v133
    %v178 = vpop.f32.mrf.mxu0
    %v179 = vadd.f32 %v157, %v178
    %180 = vmatmul.f32.gmra.mxu0 %v134
    %v181 = vpop.f32.mrf.mxu0
    %v182 = vadd.f32 %v157, %v181
    %183 = vmatmul.f32.gmra.mxu0 %v135
    %v184 = vpop.f32.mrf.mxu0
    %v185 = vadd.f32 %v157, %v184
    %186 = vmatmul.f32.gmra.mxu0 %v136
    %v187 = vpop.f32.mrf.mxu0
    %v188 = vadd.f32 %v157, %v187
    %189 = vmatmul.f32.gmra.mxu0 %v137
    %v190 = vpop.f32.mrf.mxu0
    %v191 = vadd.f32 %v157, %v190
    %192 = vmatmul.f32.gmra.mxu0 %v138
    %v193 = vpop.f32.mrf.mxu0
    %v194 = vadd.f32 %v157, %v193
    %195 = vmatmul.f32.gmra.mxu0 %v139
    %v196 = vpop.f32.mrf.mxu0
    %v197 = vadd.f32 %v157, %v196
    %198 = vdwg.mxu0
    %v199 = vmax.f32 %v176, 0.0
    %v200 = vmax.f32 %v179, 0.0
    %v201 = vmax.f32 %v182, 0.0
    %v202 = vmax.f32 %v185, 0.0
    %v203 = vmax.f32 %v188, 0.0
    %v204 = vmax.f32 %v191, 0.0
    %v205 = vmax.f32 %v194, 0.0
    %v206 = vmax.f32 %v197, 0.0
    %v207 = vld [vmem:[#allocation4] sm:$0xff]
    %v208 = vld [vmem:[#allocation4 + $0x8] sm:$0xff]
    %v209 = vld [vmem:[#allocation4 + $0x10] sm:$0xff]
    %v210 = vld [vmem:[#allocation4 + $0x18] sm:$0xff]
    %v211 = vld [vmem:[#allocation4 + $0x20] sm:$0xff]
    %v212 = vld [vmem:[#allocation4 + $0x28] sm:$0xff]
    %v213 = vld [vmem:[#allocation4 + $0x30] sm:$0xff]
    %v214 = vld [vmem:[#allocation4 + $0x38] sm:$0xff]
    %v215 = vld [vmem:[#allocation4 + $0x40] sm:$0xff]
    %v216 = vld [vmem:[#allocation4 + $0x48] sm:$0xff]
    %v217 = vld [vmem:[#allocation4 + $0x50] sm:$0xff]
    %v218 = vld [vmem:[#allocation4 + $0x58] sm:$0xff]
    %v219 = vld [vmem:[#allocation4 + $0x60] sm:$0xff]
    %v220 = vld [vmem:[#allocation4 + $0x68] sm:$0xff]
    %v221 = vld [vmem:[#allocation4 + $0x70] sm:$0xff]
    %v222 = vld [vmem:[#allocation4 + $0x78] sm:$0xff]
    %v223 = vld [vmem:[%s4 + $0x2] sm:$0x1]
    %v224 = vperm.slane %v223, 0
    %225 = vmatpush.msra.mxu0 %v222
    %226 = vmatpush.msra.mxu0 %v221
    %227 = vmatpush.msra.mxu0 %v220
    %228 = vmatpush.msra.mxu0 %v219
    %229 = vmatpush.msra.mxu0 %v218
    %230 = vmatpush.msra.mxu0 %v217
    %231 = vmatpush.msra.mxu0 %v216
    %232 = vmatpush.msra.mxu0 %v215
    %233 = vmatpush.msra.mxu0 %v214
    %234 = vmatpush.msra.mxu0 %v213
    %235 = vmatpush.msra.mxu0 %v212
    %236 = vmatpush.msra.mxu0 %v211
    %237 = vmatpush.msra.mxu0 %v210
    %238 = vmatpush.msra.mxu0 %v209
    %239 = vmatpush.msra.mxu0 %v208
    %240 = vmatpush.msra.mxu0 %v207
    %241 = vmatmul.f32.gmra.mxu0 %v199
    %v242 = vpop.f32.mrf.mxu0
    %v243 = vadd.f32 %v224, %v242
    %244 = vmatmul.f32.gmra.mxu0 %v200
    %v245 = vpop.f32.mrf.mxu0
    %v246 = vadd.f32 %v224, %v245
    %247 = vmatmul.f32.gmra.mxu0 %v201
    %v248 = vpop.f32.mrf.mxu0
    %v249 = vadd.f32 %v224, %v248
    %250 = vmatmul.f32.gmra.mxu0 %v202
    %v251 = vpop.f32.mrf.mxu0
    %v252 = vadd.f32 %v224, %v251
    %253 = vmatmul.f32.gmra.mxu0 %v203
    %v254 = vpop.f32.mrf.mxu0
    %v255 = vadd.f32 %v224, %v254
    %256 = vmatmul.f32.gmra.mxu0 %v204
    %v257 = vpop.f32.mrf.mxu0
    %v258 = vadd.f32 %v224, %v257
    %259 = vmatmul.f32.gmra.mxu0 %v205
    %v260 = vpop.f32.mrf.mxu0
    %v261 = vadd.f32 %v224, %v260
    %262 = vmatmul.f32.gmra.mxu0 %v206
    %v263 = vpop.f32.mrf.mxu0
    %v264 = vadd.f32 %v224, %v263
    %265 = vdwg.mxu0
    %266 = vst [vmem:[%s5] sm:$0xff] %v243
    %267 = vst [vmem:[%s5 + $0x8] sm:$0xff] %v246
    %268 = vst [vmem:[%s5 + $0x10] sm:$0xff] %v249
    %269 = vst [vmem:[%s5 + $0x18] sm:$0xff] %v252
    %270 = vst [vmem:[%s5 + $0x20] sm:$0xff] %v255
    %271 = vst [vmem:[%s5 + $0x28] sm:$0xff] %v258
    %272 = vst [vmem:[%s5 + $0x30] sm:$0xff] %v261
    %273 = vst [vmem:[%s5 + $0x38] sm:$0xff] %v264
    // Predicated region
    $region30: #{dqn_forward.1} parent=1 // pred_check
      _
    $region31: #{dqn_forward.1} parent=1 // pred_check_branch
      %275 = sbr.rel (0) target = $region33
    $region32: #{dqn_forward.1} parent=1 // pred_region
      _
    $region33: #{dqn_forward.1} parent=1 // pred_fallthru
      _
    // Predicated region
    $region34: #{dqn_forward.1} parent=1 // pred_check
      _
    $region35: #{dqn_forward.1} parent=1 // pred_check_branch
      %277 = sbr.rel (0) target = $region37
    $region36: #{dqn_forward.1} parent=1 // pred_region
      _
    $region37: #{dqn_forward.1} parent=1 // pred_fallthru
      _
    %278 = vsyncpa [#allocation3], 1
    %279 = vsyncpa [#allocation5], 1

</llo_original>
